<compile_context>
chip_gen: v5e
topology: v5e:2x2
jax: 0.10.0
libtpu: 0.0.40
codegen_flags: <defaults>
</compile_context>

<pallas_src>
import functools

import jax
import jax.numpy as jnp
import numpy as np
from jax.experimental import pallas as pl
from jax.experimental.pallas import tpu as pltpu


# ----------------------------- Pallas kernel -------------------------------

def _nvr_kernel(vox_ref,     # (DC, TN)  bf16  voxel features, pixels on lanes
                wcat_ref,    # (2F, DC)  bf16  [w_vox | 2*w_proj@w_img]^T
                bcat_ref,    # (2F, 1)   f32   [b_vox | b_img - colsum(w_img)]^T
                whead_ref,   # (3, 2F)   bf16  (2*[w_out; w_out])^T
                bhead_ref,   # (3, 1)    f32   (2*(b_out + relu(light branch)@w_out))^T
                out_ref):    # (3, TN)   f32
    # voxel branch + (folded) composite-image branch in one MXU pass
    feats = jnp.dot(wcat_ref[...], vox_ref[...],
                    preferred_element_type=jnp.float32)            # (2F, TN) f32
    feats = jnp.maximum(feats + bcat_ref[...], 0.0)                # relu, f32

    # fused output head; light branch + the tanh*0.5+0.5 rescale are folded into
    # whead/bhead, so this is just sigmoid(whead @ feats + bhead).
    logits = jnp.dot(whead_ref[...], feats.astype(jnp.bfloat16),
                     preferred_element_type=jnp.float32) + bhead_ref[...]
    out_ref[...] = 1.0 / (1.0 + jnp.exp(-logits))                  # in [0, 1]


# ------------------------------ param folding --------------------------------

def _fold_params(params, light):
    """Fold projection / image / light branches + output rescale into 4 tensors."""
    w_proj, w_vox, b_vox = params["w_proj"], params["w_vox"], params["b_vox"]
    w_img, b_img = params["w_img"], params["b_img"]
    w_light, b_light = params["w_light"], params["b_light"]
    w_out, b_out = params["w_out"], params["b_out"]

    # comp = 2*vox@w_proj - 1  =>  comp@w_img = vox@(2*w_proj@w_img) - colsum(w_img)
    w_img_eff = 2.0 * jnp.dot(w_proj, w_img)                          # (DC, F)
    b_img_eff = b_img - jnp.sum(w_img, axis=0, keepdims=True)         # (1, F)

    w_cat = jnp.concatenate([w_vox, w_img_eff], axis=1)               # (DC, 2F)
    b_cat = jnp.concatenate([b_vox, b_img_eff], axis=1)               # (1, 2F)

    # light position is identical across the batch -> its relu'd feature is a
    # per-call constant; fold its contribution through w_out into the bias.
    light_feat = jnp.maximum(jnp.dot(light, w_light) + b_light, 0.0)  # (1, F)
    b_out_eff = b_out + jnp.dot(light_feat, w_out)                    # (1, 3)

    # (a + b) @ w_out == [a | b] @ [w_out; w_out];  tanh(z)*0.5+0.5 == sigmoid(2z)
    w_head = 2.0 * jnp.concatenate([w_out, w_out], axis=0)            # (2F, 3)
    b_head = 2.0 * b_out_eff                                          # (1, 3)

    # transpose everything once so the kernel works with pixels on the lane axis
    return w_cat.T, b_cat.T, w_head.T, b_head.T                       # (2F,DC),(2F,1),(3,2F),(3,1)


# ------------------------------ wrapper -------------------------------------

def nvr_renderer_forward(voxels, params):
    """voxels: (B, D, H, W, C) float32.  Returns (B, 3, H, W) float32 in [0,1]."""
    B, D, H, W, C = voxels.shape
    DC = D * C
    rows = B * H * W
    F = params["w_vox"].shape[1]

    # fixed light position (same for every batch element, as in the PyTorch forward)
    light = jnp.asarray([[-1.0901234, 0.01720496, 2.6110773]], jnp.float32)  # (1,3)

    # random rotation angles (theta, phi, 0) -- deterministic via PRNGKey
    key = jax.random.PRNGKey(0)
    ku, kv = jax.random.split(key)
    u = jax.random.uniform(ku, (B, 1))
    v = jax.random.uniform(kv, (B, 1))
    theta = jnp.arccos(2.0 * u - 1.0)
    phi = 2.0 * jnp.pi * v
    rotation_angles = jnp.concatenate([theta, phi, jnp.zeros((B, 1))], axis=1)
    del rotation_angles  # TODO(synk): consumed only by the real grid-resampler.

    w_cat_t, b_cat_t, w_head_t, b_head_t = _fold_params(params, light)

    # pixels-on-lanes layout; cast the dominant MXU operand to bf16.
    vox_t = (jnp.transpose(voxels, (1, 4, 0, 2, 3))       # (D, C, B, H, W)
             .reshape(DC, rows).astype(jnp.bfloat16))     # (DC, rows)

    # Lane tiling: >=2 parallel tiles (both v7x TensorCores busy), each a multiple
    # of 128 lanes so all loads/stores are full-width; capped so VMEM stays small.
    LANE = 128
    if rows % (2 * LANE) == 0:
        TN = rows // 2
        while TN > 32768 and TN % 2 == 0 and (TN // 2) % LANE == 0:
            TN //= 2
    else:
        TN = rows            # full array as a single block (always layout-legal)
    NT = rows // TN

    const = lambda t: (0, 0)

    out = pl.pallas_call(
        _nvr_kernel,
        out_shape=jax.ShapeDtypeStruct((3, rows), jnp.float32),
        grid=(NT,),
        in_specs=[
            pl.BlockSpec((DC, TN),     lambda t: (0, t)),   # voxel pixels (bf16)
            pl.BlockSpec((2 * F, DC),  const),              # fused weight (bf16)
            pl.BlockSpec((2 * F, 1),   const),              # fused bias (f32)
            pl.BlockSpec((3, 2 * F),   const),              # head weight (bf16)
            pl.BlockSpec((3, 1),       const),              # head bias (f32)
        ],
        out_specs=pl.BlockSpec((3, TN), lambda t: (0, t)),  # lane-dense output slab
        compiler_params=pltpu.CompilerParams(
            dimension_semantics=("parallel",)),
    )(vox_t,
      w_cat_t.astype(jnp.bfloat16), b_cat_t,
      w_head_t.astype(jnp.bfloat16), b_head_t)

    # (3, rows) -> (3, B, H, W) -> NCHW (B, 3, H, W), matching the torch module
    return jnp.transpose(out.reshape(3, B, H, W), (1, 0, 2, 3))


def init_params(key, D, C, F):
    DC = D * C
    ks = jax.random.split(key, 6)
    s = lambda fan_in: 1.0 / np.sqrt(fan_in)
    return {
        "w_proj":  jax.random.normal(ks[0], (DC, 3), jnp.float32) * s(DC),
        "w_vox":   jax.random.normal(ks[1], (DC, F), jnp.float32) * s(DC),
        "b_vox":   jnp.zeros((1, F), jnp.float32),
        "w_img":   jax.random.normal(ks[2], (3, F), jnp.float32) * s(3),
        "b_img":   jnp.zeros((1, F), jnp.float32),
        "w_light": jax.random.normal(ks[3], (3, F), jnp.float32) * s(3),
        "b_light": jnp.zeros((1, F), jnp.float32),
        "w_out":   jax.random.normal(ks[4], (F, 3), jnp.float32) * s(F),
        "b_out":   jnp.zeros((1, 3), jnp.float32),
    }


if __name__ == "__main__":
    B, D, H, W, C = 2, 16, 16, 16, 4      # small shapes consistent with the module
    F = 32                                 # hidden feature width

    key = jax.random.PRNGKey(0)
    k_vox, k_par = jax.random.split(key)
    voxels = jax.random.uniform(k_vox, (B, D, H, W, C), jnp.float32)
    params = init_params(k_par, D, C, F)

    fwd = jax.jit(functools.partial(nvr_renderer_forward, params=params))
    out = fwd(voxels)
    jax.block_until_ready(out)

    assert out.shape == (B, 3, H, W), out.shape
    assert out.dtype == jnp.float32
    assert bool(jnp.all(jnp.isfinite(out)))
    assert bool(jnp.all((out >= 0.0) & (out <= 1.0)))
    print("KERNEL_OK")
</pallas_src>

<mosaic_0001>
module attributes {stable_mosaic.version = 11 : i64} {
  func.func @_nvr_kernel(%arg0: i32, %arg1: memref<64x256xbf16, #tpu.memory_space<vmem>>, %arg2: memref<64x64xbf16, #tpu.memory_space<vmem>>, %arg3: memref<64x1xf32, #tpu.memory_space<vmem>>, %arg4: memref<3x64xbf16, #tpu.memory_space<vmem>>, %arg5: memref<3x1xf32, #tpu.memory_space<vmem>>, %arg6: memref<3x256xf32, #tpu.memory_space<vmem>>) attributes {dimension_semantics = [#tpu.dimension_semantics<parallel>], iteration_bounds = array<i64: 2>, scalar_prefetch = 0 : i64, scratch_operands = 0 : i64, tpu.core_type = #tpu.core_type<tc>, window_params = [{transform_indices = @transform_0, window_bounds = array<i64: 64, 256>}, {pipeline_mode = #tpu.pipeline_mode<synchronous>, transform_indices = @transform_1, window_bounds = array<i64: 64, 64>}, {pipeline_mode = #tpu.pipeline_mode<synchronous>, transform_indices = @transform_2, window_bounds = array<i64: 64, 1>}, {pipeline_mode = #tpu.pipeline_mode<synchronous>, transform_indices = @transform_3, window_bounds = array<i64: 3, 64>}, {pipeline_mode = #tpu.pipeline_mode<synchronous>, transform_indices = @transform_4, window_bounds = array<i64: 3, 1>}, {transform_indices = @transform_5, window_bounds = array<i64: 3, 256>}]} {
    %c0 = arith.constant 0 : index
    %c0_0 = arith.constant 0 : index
    %0 = vector.load %arg2[%c0, %c0_0] : memref<64x64xbf16, #tpu.memory_space<vmem>>, vector<64x64xbf16>
    %c0_1 = arith.constant 0 : index
    %c0_2 = arith.constant 0 : index
    %1 = vector.load %arg1[%c0_1, %c0_2] : memref<64x256xbf16, #tpu.memory_space<vmem>>, vector<64x256xbf16>
    %cst = arith.constant dense<0.000000e+00> : vector<64x256xf32>
    %2 = tpu.matmul %0, %1, %cst {dimension_numbers = #tpu.dot_dimension_numbers<[1], [0], [0], [1], [0, 0, 1, 1], [], []>} : vector<64x64xbf16>, vector<64x256xbf16>, vector<64x256xf32> -> vector<64x256xf32>
    %c0_3 = arith.constant 0 : index
    %c0_4 = arith.constant 0 : index
    %3 = vector.load %arg3[%c0_3, %c0_4] : memref<64x1xf32, #tpu.memory_space<vmem>>, vector<64x1xf32>
    %4 = vector.broadcast %3 : vector<64x1xf32> to vector<64x256xf32>
    %5 = arith.addf %2, %4 : vector<64x256xf32>
    %cst_5 = arith.constant 0.000000e+00 : f32
    %6 = vector.broadcast %cst_5 : f32 to vector<64x256xf32>
    %7 = arith.maximumf %5, %6 : vector<64x256xf32>
    %c0_6 = arith.constant 0 : index
    %c0_7 = arith.constant 0 : index
    %8 = vector.load %arg4[%c0_6, %c0_7] : memref<3x64xbf16, #tpu.memory_space<vmem>>, vector<3x64xbf16>
    %9 = arith.truncf %7 : vector<64x256xf32> to vector<64x256xbf16>
    %cst_8 = arith.constant dense<0.000000e+00> : vector<3x256xf32>
    %10 = tpu.matmul %8, %9, %cst_8 {dimension_numbers = #tpu.dot_dimension_numbers<[1], [0], [0], [1], [0, 0, 1, 1], [], []>} : vector<3x64xbf16>, vector<64x256xbf16>, vector<3x256xf32> -> vector<3x256xf32>
    %c0_9 = arith.constant 0 : index
    %c0_10 = arith.constant 0 : index
    %11 = vector.load %arg5[%c0_9, %c0_10] : memref<3x1xf32, #tpu.memory_space<vmem>>, vector<3x1xf32>
    %12 = vector.broadcast %11 : vector<3x1xf32> to vector<3x256xf32>
    %13 = arith.addf %10, %12 : vector<3x256xf32>
    %cst_11 = arith.constant 0.000000e+00 : f32
    %14 = vector.broadcast %cst_11 : f32 to vector<3x256xf32>
    %15 = arith.subf %14, %13 : vector<3x256xf32>
    %16 = math.exp %15 : vector<3x256xf32>
    %cst_12 = arith.constant 1.000000e+00 : f32
    %17 = vector.broadcast %cst_12 : f32 to vector<3x256xf32>
    %18 = arith.addf %17, %16 : vector<3x256xf32>
    %cst_13 = arith.constant 1.000000e+00 : f32
    %19 = vector.broadcast %cst_13 : f32 to vector<3x256xf32>
    %20 = arith.divf %19, %18 : vector<3x256xf32>
    %c0_14 = arith.constant 0 : index
    %c0_15 = arith.constant 0 : index
    %21 = vector.load %arg6[%c0_14, %c0_15] : memref<3x256xf32, #tpu.memory_space<vmem>>, vector<3x256xf32>
    tpu.vector_store %arg6[%c0_14, %c0_15], %20 {strides = array<i32>} : memref<3x256xf32, #tpu.memory_space<vmem>>, vector<3x256xf32>,
    return
  }
  func.func @transform_0(%arg0: i32) -> (i32, i32) {
    %c0_i32 = arith.constant 0 : i32
    %c0_i32_0 = arith.constant 0 : i32
    return %c0_i32, %arg0 : i32, i32
  }
  func.func @transform_1(%arg0: i32) -> (i32, i32) {
    %c0_i32 = arith.constant 0 : i32
    %c0_i32_0 = arith.constant 0 : i32
    %c0_i32_1 = arith.constant 0 : i32
    return %c0_i32, %c0_i32_0 : i32, i32
  }
  func.func @transform_2(%arg0: i32) -> (i32, i32) {
    %c0_i32 = arith.constant 0 : i32
    %c0_i32_0 = arith.constant 0 : i32
    %c0_i32_1 = arith.constant 0 : i32
    return %c0_i32, %c0_i32_0 : i32, i32
  }
  func.func @transform_3(%arg0: i32) -> (i32, i32) {
    %c0_i32 = arith.constant 0 : i32
    %c0_i32_0 = arith.constant 0 : i32
    %c0_i32_1 = arith.constant 0 : i32
    return %c0_i32, %c0_i32_0 : i32, i32
  }
  func.func @transform_4(%arg0: i32) -> (i32, i32) {
    %c0_i32 = arith.constant 0 : i32
    %c0_i32_0 = arith.constant 0 : i32
    %c0_i32_1 = arith.constant 0 : i32
    return %c0_i32, %c0_i32_0 : i32, i32
  }
  func.func @transform_5(%arg0: i32) -> (i32, i32) {
    %c0_i32 = arith.constant 0 : i32
    %c0_i32_0 = arith.constant 0 : i32
    return %c0_i32, %arg0 : i32, i32
  }
}

</mosaic_0001>

<llo_original>
// kernel: nvr_renderer_forward.1
$region0: #{nvr_renderer_forward.1}
  #allocation0 [shape = 'u32[]', space=smem, size = 0x4, offset = 0x4, fixed_abs, tag = 'smem constant byte address 0x4 - core index']
  #allocation1 [shape = 'u32[72,128]{1,0:T(1,128)}', space=vmem, size = 0x9000, scoped, tag = 'internal scratch']
  %s0 = inlined_call_operand.vmem [shape: bf16[64,512], index: 0, kind: input, shape index: {}]
  %s1 = inlined_call_operand.vmem [shape: bf16[64,64], index: 1, kind: input, shape index: {}]
  %s2 = inlined_call_operand.vmem [shape: f32[64,1], index: 2, kind: input, shape index: {}]
  %s3 = inlined_call_operand.vmem [shape: bf16[3,64], index: 3, kind: input, shape index: {}]
  %s4 = inlined_call_operand.vmem [shape: f32[3,1], index: 4, kind: input, shape index: {}]
  %s5 = inlined_call_operand.vmem [shape: f32[3,512], index: 5, kind: output, shape index: {}]
  %s6 = sld [smem:[#allocation0]]
  $region91: #{nvr_renderer_forward.1} parent=0
    _
  %s8 = ssub.s32 1, %s6
  %s9 = scalar_select 0, %s8, %s6
  $region1: #{nvr_renderer_forward.1} parent=0
    #allocation2 [shape = 'u8[65536]{0}', space=vmem, size = 0x10000, scoped, tag = 'input window, operand 0']
    loop: start=0, step=1, limit=4
    $region2: #{nvr_renderer_forward.1} parent=1 // loop_pre_header
      _
    $region3: #{nvr_renderer_forward.1} parent=1 // loop_header
      %s11 = sphi 0, %s15
      %p12 = scmp.ge.s32.totalorder %s11, 4
      %s21 = sphi 0, %s23
      %s24 = sphi 0, %s21
      %s25 = sphi 0, %s24
      %s41 = sphi 0, %s25
      %s45 = sphi 0, %s45
      %s47 = sphi 0, %s45
      %s48 = sphi 0, %s47
      %s62 = sphi 0, %s48
      %s66 = sphi 0, %s66
      %s68 = sphi 0, %s66
      %s69 = sphi 0, %s68
      %s83 = sphi 0, %s69
      %s87 = sphi 0, %s87
      %s89 = sphi 0, %s87
      %s90 = sphi 0, %s89
      %s104 = sphi 0, %s90
      %s108 = sphi 0, %s108
      %s110 = sphi 0, %s108
      %s111 = sphi 0, %s110
      %s125 = sphi 0, %s111
      %s131 = sphi 0, %s133
      %s134 = sphi 0, %s131
      %s135 = sphi 0, %s134
      %s151 = sphi 0, %s135
    $region4: #{nvr_renderer_forward.1} parent=1 // loop_header_branch
      %14 = sbr.rel (%p12) target = $region8
    $region5: #{nvr_renderer_forward.1} parent=1 // loop_body
      %s16 = ssub.s32 %s11, 1
      %s17 = ssub.s32 %s11, 2
      %s18 = sadd.s32 %s11, 1
      %s19 = ssub.s32 %s11, %s18
      %p20 = scmp.eq.s32.totalorder %s19, 0
      %s22 = sadd.s32 %s21, 1
      %s23 = scalar_select %p20, %s21, %s22
      %p26 = pneg %p20
      %p27 = scmp.eq.s32.totalorder %s11, 1
      %p28 = por %p26, %p27
      %p29 = scmp.ne.s32.totalorder %s21, %s24
      %p30 = scmp.eq.s32.totalorder %s11, 0
      %p31 = por %p29, %p30
      %p32 = scmp.ne.s32.totalorder %s21, %s24
      %p33 = scmp.eq.s32.totalorder %s16, 1
      %p34 = por %p32, %p33
      %p35 = scmp.ne.s32.totalorder %s24, %s25
      %p36 = scmp.eq.s32.totalorder %s16, 0
      %p37 = por %p35, %p36
      %p38 = scmp.ne.s32.totalorder %s24, %s25
      %p39 = scmp.eq.s32.totalorder %s17, 1
      %p40 = por %p38, %p39
      %p42 = scmp.ne.s32.totalorder %s25, %s41
      %p43 = scmp.eq.s32.totalorder %s17, 0
      %p44 = por %p42, %p43
      %s46 = sadd.s32 %s45, 1
      %p49 = scmp.eq.s32.totalorder %s11, 1
      %p50 = scmp.ne.s32.totalorder %s45, %s47
      %p51 = scmp.eq.s32.totalorder %s11, 0
      %p52 = por %p50, %p51
      %p53 = scmp.ne.s32.totalorder %s45, %s47
      %p54 = scmp.eq.s32.totalorder %s16, 1
      %p55 = por %p53, %p54
      %p56 = scmp.ne.s32.totalorder %s47, %s48
      %p57 = scmp.eq.s32.totalorder %s16, 0
      %p58 = por %p56, %p57
      %p59 = scmp.ne.s32.totalorder %s47, %s48
      %p60 = scmp.eq.s32.totalorder %s17, 1
      %p61 = por %p59, %p60
      %p63 = scmp.ne.s32.totalorder %s48, %s62
      %p64 = scmp.eq.s32.totalorder %s17, 0
      %p65 = por %p63, %p64
      %s67 = sadd.s32 %s66, 1
      %p70 = scmp.eq.s32.totalorder %s11, 1
      %p71 = scmp.ne.s32.totalorder %s66, %s68
      %p72 = scmp.eq.s32.totalorder %s11, 0
      %p73 = por %p71, %p72
      %p74 = scmp.ne.s32.totalorder %s66, %s68
      %p75 = scmp.eq.s32.totalorder %s16, 1
      %p76 = por %p74, %p75
      %p77 = scmp.ne.s32.totalorder %s68, %s69
      %p78 = scmp.eq.s32.totalorder %s16, 0
      %p79 = por %p77, %p78
      %p80 = scmp.ne.s32.totalorder %s68, %s69
      %p81 = scmp.eq.s32.totalorder %s17, 1
      %p82 = por %p80, %p81
      %p84 = scmp.ne.s32.totalorder %s69, %s83
      %p85 = scmp.eq.s32.totalorder %s17, 0
      %p86 = por %p84, %p85
      %s88 = sadd.s32 %s87, 1
      %p91 = scmp.eq.s32.totalorder %s11, 1
      %p92 = scmp.ne.s32.totalorder %s87, %s89
      %p93 = scmp.eq.s32.totalorder %s11, 0
      %p94 = por %p92, %p93
      %p95 = scmp.ne.s32.totalorder %s87, %s89
      %p96 = scmp.eq.s32.totalorder %s16, 1
      %p97 = por %p95, %p96
      %p98 = scmp.ne.s32.totalorder %s89, %s90
      %p99 = scmp.eq.s32.totalorder %s16, 0
      %p100 = por %p98, %p99
      %p101 = scmp.ne.s32.totalorder %s89, %s90
      %p102 = scmp.eq.s32.totalorder %s17, 1
      %p103 = por %p101, %p102
      %p105 = scmp.ne.s32.totalorder %s90, %s104
      %p106 = scmp.eq.s32.totalorder %s17, 0
      %p107 = por %p105, %p106
      %s109 = sadd.s32 %s108, 1
      %p112 = scmp.eq.s32.totalorder %s11, 1
      %p113 = scmp.ne.s32.totalorder %s108, %s110
      %p114 = scmp.eq.s32.totalorder %s11, 0
      %p115 = por %p113, %p114
      %p116 = scmp.ne.s32.totalorder %s108, %s110
      %p117 = scmp.eq.s32.totalorder %s16, 1
      %p118 = por %p116, %p117
      %p119 = scmp.ne.s32.totalorder %s110, %s111
      %p120 = scmp.eq.s32.totalorder %s16, 0
      %p121 = por %p119, %p120
      %p122 = scmp.ne.s32.totalorder %s110, %s111
      %p123 = scmp.eq.s32.totalorder %s17, 1
      %p124 = por %p122, %p123
      %p126 = scmp.ne.s32.totalorder %s111, %s125
      %p127 = scmp.eq.s32.totalorder %s17, 0
      %p128 = por %p126, %p127
      %s129 = ssub.s32 %s11, %s18
      %p130 = scmp.eq.s32.totalorder %s129, 0
      %s132 = sadd.s32 %s131, 1
      %s133 = scalar_select %p130, %s131, %s132
      %p136 = pneg %p130
      %p137 = scmp.eq.s32.totalorder %s11, 1
      %p138 = por %p136, %p137
      %p139 = scmp.ne.s32.totalorder %s131, %s134
      %p140 = scmp.eq.s32.totalorder %s11, 0
      %p141 = por %p139, %p140
      %p142 = scmp.ne.s32.totalorder %s131, %s134
      %p143 = scmp.eq.s32.totalorder %s16, 1
      %p144 = por %p142, %p143
      %p145 = scmp.ne.s32.totalorder %s134, %s135
      %p146 = scmp.eq.s32.totalorder %s16, 0
      %p147 = por %p145, %p146
      %p148 = scmp.ne.s32.totalorder %s134, %s135
      %p149 = scmp.eq.s32.totalorder %s17, 1
      %p150 = por %p148, %p149
      %p152 = scmp.ne.s32.totalorder %s135, %s151
      %p153 = scmp.eq.s32.totalorder %s17, 0
      %p154 = por %p152, %p153
      %p155 = scmp.le.s32.totalorder 1, %s11
      %p156 = scmp.lt.s32.totalorder %s11, 3
      %p157 = pnand %p155, %p156
      %p158 = pneg %p157
      // Predicated region
      $region9: #{nvr_renderer_forward.1} parent=5 // pred_check
        _
      $region10: #{nvr_renderer_forward.1} parent=5 // pred_check_branch
        %160 = sbr.rel (%p157) target = $region12
      $region11: #{nvr_renderer_forward.1} parent=5 // pred_region
        %s161 = ssub.s32 %s11, 1
        // Predicated region
        $region13: #{nvr_renderer_forward.1} parent=11 // pred_check
          %p162 = pneg %p58
        $region14: #{nvr_renderer_forward.1} parent=11 // pred_check_branch
          %164 = sbr.rel (%p162) target = $region16
        $region15: #{nvr_renderer_forward.1} parent=11 // pred_region
          _
        $region16: #{nvr_renderer_forward.1} parent=11 // pred_fallthru
          _
        // Predicated region
        $region17: #{nvr_renderer_forward.1} parent=11 // pred_check
          %p165 = pneg %p79
        $region18: #{nvr_renderer_forward.1} parent=11 // pred_check_branch
          %167 = sbr.rel (%p165) target = $region20
        $region19: #{nvr_renderer_forward.1} parent=11 // pred_region
          _
        $region20: #{nvr_renderer_forward.1} parent=11 // pred_fallthru
          _
        // Predicated region
        $region21: #{nvr_renderer_forward.1} parent=11 // pred_check
          %p168 = pneg %p100
        $region22: #{nvr_renderer_forward.1} parent=11 // pred_check_branch
          %170 = sbr.rel (%p168) target = $region24
        $region23: #{nvr_renderer_forward.1} parent=11 // pred_region
          _
        $region24: #{nvr_renderer_forward.1} parent=11 // pred_fallthru
          _
        // Predicated region
        $region25: #{nvr_renderer_forward.1} parent=11 // pred_check
          %p171 = pneg %p121
        $region26: #{nvr_renderer_forward.1} parent=11 // pred_check_branch
          %173 = sbr.rel (%p171) target = $region28
        $region27: #{nvr_renderer_forward.1} parent=11 // pred_region
          _
        $region28: #{nvr_renderer_forward.1} parent=11 // pred_fallthru
          _
      $region12: #{nvr_renderer_forward.1} parent=5 // pred_fallthru
        _
      %p174 = scmp.lt.s32.totalorder %s11, 2
      // Predicated region
      $region29: #{nvr_renderer_forward.1} parent=5 // pred_check
        %p175 = pneg %p174
      $region30: #{nvr_renderer_forward.1} parent=5 // pred_check_branch
        %177 = sbr.rel (%p175) target = $region32
      $region31: #{nvr_renderer_forward.1} parent=5 // pred_region
        // Predicated region
        $region33: #{nvr_renderer_forward.1} parent=31 // pred_check
          %p178 = pneg %p31
        $region34: #{nvr_renderer_forward.1} parent=31 // pred_check_branch
          %180 = sbr.rel (%p178) target = $region36
        $region35: #{nvr_renderer_forward.1} parent=31 // pred_region
          %s181 = sand.u32 %s21, 1
          %s182 = sand.u32 %s21, 1
          %s183 = smul.addr %s182, 64
          %s184 = scalar_lea.vmem [#allocation2], %s183
          %s185 = smul.u32 2, %s11
          %s186 = smul.addr %s185, 4
          %s187 = scalar_lea.vmem %s0, %s186
          // Predicated region
          $region37: #{nvr_renderer_forward.1} parent=35 // pred_check
            _
          $region38: #{nvr_renderer_forward.1} parent=35 // pred_check_branch
            %189 = sbr.rel (0) target = $region40
          $region39: #{nvr_renderer_forward.1} parent=35 // pred_region
            // Predicated region
            $region41: #{nvr_renderer_forward.1} parent=39 // pred_check
              _
            $region42: #{nvr_renderer_forward.1} parent=39 // pred_check_branch
              %191 = sbr.rel (0) target = $region44
            $region43: #{nvr_renderer_forward.1} parent=39 // pred_region
              // Predicated region
              $region56: #{nvr_renderer_forward.1} parent=43 // pred_check
                _
              $region57: #{nvr_renderer_forward.1} parent=43 // pred_check_branch
                %221 = sbr.rel (0) target = $region59
              $region58: #{nvr_renderer_forward.1} parent=43 // pred_region
                loop: start=0, step=1, limit=1
                $region60: #{nvr_renderer_forward.1} parent=58 // loop_pre_header
                  _
                $region61: #{nvr_renderer_forward.1} parent=58 // loop_header
                  %s223 = sphi 0, %s227
                  %p224 = scmp.ge.s32.totalorder %s223, 1
                  %s228 = sphi %s187, %s187
                  %s229 = sphi %s184, %s184
                $region62: #{nvr_renderer_forward.1} parent=58 // loop_header_branch
                  %226 = sbr.rel (%p224) target = $region66
                $region63: #{nvr_renderer_forward.1} parent=58 // loop_body
                  %v230 = vld [vmem:[%s228] sm:$0xff]
                  %231 = vst [vmem:[%s229] sm:$0xff] %v230
                  %v232 = vld [vmem:[%s228 + $0x10] sm:$0xff]
                  %233 = vst [vmem:[%s229 + $0x8] sm:$0xff] %v232
                  %v234 = vld [vmem:[%s228 + $0x20] sm:$0xff]
                  %235 = vst [vmem:[%s229 + $0x10] sm:$0xff] %v234
                  %v236 = vld [vmem:[%s228 + $0x30] sm:$0xff]
                  %237 = vst [vmem:[%s229 + $0x18] sm:$0xff] %v236
                  %v238 = vld [vmem:[%s228 + $0x40] sm:$0xff]
                  %239 = vst [vmem:[%s229 + $0x20] sm:$0xff] %v238
                  %v240 = vld [vmem:[%s228 + $0x50] sm:$0xff]
                  %241 = vst [vmem:[%s229 + $0x28] sm:$0xff] %v240
                  %v242 = vld [vmem:[%s228 + $0x60] sm:$0xff]
                  %243 = vst [vmem:[%s229 + $0x30] sm:$0xff] %v242
                  %v244 = vld [vmem:[%s228 + $0x70] sm:$0xff]
                  %245 = vst [vmem:[%s229 + $0x38] sm:$0xff] %v244
                $region64: #{nvr_renderer_forward.1} parent=58 // loop_footer
                  %s227 = sadd.s32 1, %s223
                $region65: #{nvr_renderer_forward.1} parent=58 // loop_footer_branch
                  %222 = sbr.rel target = $region61
                $region66: #{nvr_renderer_forward.1} parent=58 // loop_exit
                  _
              $region59: #{nvr_renderer_forward.1} parent=43 // pred_fallthru
                _
              // Predicated region
              $region67: #{nvr_renderer_forward.1} parent=43 // pred_check
                _
              $region68: #{nvr_renderer_forward.1} parent=43 // pred_check_branch
                %247 = sbr.rel target = $region70
              $region69: #{nvr_renderer_forward.1} parent=43 // pred_region
                _
              $region70: #{nvr_renderer_forward.1} parent=43 // pred_fallthru
                _
            $region44: #{nvr_renderer_forward.1} parent=39 // pred_fallthru
              _
            // Predicated region
            $region45: #{nvr_renderer_forward.1} parent=39 // pred_check
              _
            $region46: #{nvr_renderer_forward.1} parent=39 // pred_check_branch
              %193 = sbr.rel target = $region48
            $region47: #{nvr_renderer_forward.1} parent=39 // pred_region
              %s195 = ssub.s32 256, 1
              loop: start=0, step=1, limit=1
              $region49: #{nvr_renderer_forward.1} parent=47 // loop_pre_header
                _
              $region50: #{nvr_renderer_forward.1} parent=47 // loop_header
                %s197 = sphi 0, %s201
                %p198 = scmp.ge.s32.totalorder %s197, 1
                %s202 = sphi %s187, %s187
                %s203 = sphi %s184, %s184
              $region51: #{nvr_renderer_forward.1} parent=47 // loop_header_branch
                %200 = sbr.rel (%p198) target = $region55
              $region52: #{nvr_renderer_forward.1} parent=47 // loop_body
                %v204 = vld [vmem:[%s202] sm:%s195]
                %205 = vst [vmem:[%s203] sm:%s195] %v204
                %v206 = vld [vmem:[%s202 + $0x10] sm:%s195]
                %207 = vst [vmem:[%s203 + $0x8] sm:%s195] %v206
                %v208 = vld [vmem:[%s202 + $0x20] sm:%s195]
                %209 = vst [vmem:[%s203 + $0x10] sm:%s195] %v208
                %v210 = vld [vmem:[%s202 + $0x30] sm:%s195]
                %211 = vst [vmem:[%s203 + $0x18] sm:%s195] %v210
                %v212 = vld [vmem:[%s202 + $0x40] sm:%s195]
                %213 = vst [vmem:[%s203 + $0x20] sm:%s195] %v212
                %v214 = vld [vmem:[%s202 + $0x50] sm:%s195]
                %215 = vst [vmem:[%s203 + $0x28] sm:%s195] %v214
                %v216 = vld [vmem:[%s202 + $0x60] sm:%s195]
                %217 = vst [vmem:[%s203 + $0x30] sm:%s195] %v216
                %v218 = vld [vmem:[%s202 + $0x70] sm:%s195]
                %219 = vst [vmem:[%s203 + $0x38] sm:%s195] %v218
              $region53: #{nvr_renderer_forward.1} parent=47 // loop_footer
                %s201 = sadd.s32 1, %s197
              $region54: #{nvr_renderer_forward.1} parent=47 // loop_footer_branch
                %196 = sbr.rel target = $region50
              $region55: #{nvr_renderer_forward.1} parent=47 // loop_exit
                _
            $region48: #{nvr_renderer_forward.1} parent=39 // pred_fallthru
              _
          $region40: #{nvr_renderer_forward.1} parent=35 // pred_fallthru
            _
          %248 = vnop
        $region36: #{nvr_renderer_forward.1} parent=31 // pred_fallthru
          _
      $region32: #{nvr_renderer_forward.1} parent=5 // pred_fallthru
        _
      %p249 = scmp.le.s32.totalorder 1, %s11
      %p250 = scmp.lt.s32.totalorder %s11, 3
      %p251 = pnand %p249, %p250
      %p252 = pneg %p251
      // Predicated region
      $region71: #{nvr_renderer_forward.1} parent=5 // pred_check
        _
      $region72: #{nvr_renderer_forward.1} parent=5 // pred_check_branch
        %254 = sbr.rel (%p251) target = $region74
      $region73: #{nvr_renderer_forward.1} parent=5 // pred_region
        %s255 = ssub.s32 %s11, 1
        %s256 = sand.u32 %s24, 1
        %s257 = sand.u32 %s24, 1
        %s258 = smul.addr %s257, 64
        %s259 = scalar_lea.vmem [#allocation2], %s258
        // Predicated region
        $region75: #{nvr_renderer_forward.1} parent=73 // pred_check
          %p260 = pneg %p37
        $region76: #{nvr_renderer_forward.1} parent=73 // pred_check_branch
          %262 = sbr.rel (%p260) target = $region78
        $region77: #{nvr_renderer_forward.1} parent=73 // pred_region
          _
        $region78: #{nvr_renderer_forward.1} parent=73 // pred_fallthru
          _
        %s263 = sand.u32 %s24, 1
        %s264 = sand.u32 %s24, 1
        %s265 = smul.addr %s264, 64
        %s266 = scalar_lea.vmem [#allocation2], %s265
        %p267 = pneg %p37
        %p268 = pneg %p34
        %p269 = pneg %p58
        %p270 = pneg %p55
        %p271 = pneg %p79
        %p272 = pneg %p76
        %p273 = pneg %p100
        %p274 = pneg %p97
        %p275 = pneg %p121
        %p276 = pneg %p118
        %p277 = pneg %p147
        %p278 = pneg %p144
        %s279 = smul.u32 2, %s16
        %p280 = scmp.lt.s32.totalorder %s279, 3
        %s281 = scalar_select %p280, %s279, 3
        %s282 = smul.addr %s281, 4
        %s283 = scalar_lea.vmem %s5, %s282
        %s284 = smul.u32 2, %s16
        %s285 = smul.u32 2, %s16
        %p286 = scmp.lt.s32.totalorder %s285, 3
        %s287 = scalar_select %p286, %s285, 3
        %s288 = smul.addr %s287, 4
        %s289 = scalar_lea.vmem %s5, %s288
        %s290 = smul.u32 2, %s16
        %v292 = vld [vmem:[%s1] sm:$0xf]
        %v293 = vld [vmem:[%s1 + $0x4] sm:$0xf]
        %v294 = vld [vmem:[%s1 + $0x8] sm:$0xf]
        %v295 = vld [vmem:[%s1 + $0xc] sm:$0xf]
        %v296 = vld [vmem:[%s1 + $0x10] sm:$0xf]
        %v297 = vld [vmem:[%s1 + $0x14] sm:$0xf]
        %v298 = vld [vmem:[%s1 + $0x18] sm:$0xf]
        %v299 = vld [vmem:[%s1 + $0x1c] sm:$0xf]
        %v300 = vld [vmem:[%s259] sm:$0xff]
        %v301 = vld [vmem:[%s259 + $0x8] sm:$0xff]
        %v302 = vld [vmem:[%s259 + $0x10] sm:$0xff]
        %v303 = vld [vmem:[%s259 + $0x18] sm:$0xff]
        %v304 = vld [vmem:[%s259 + $0x20] sm:$0xff]
        %v305 = vld [vmem:[%s259 + $0x28] sm:$0xff]
        %v306 = vld [vmem:[%s259 + $0x30] sm:$0xff]
        %v307 = vld [vmem:[%s259 + $0x38] sm:$0xff]
        %v308 = vld [vmem:[%s2] sm:$0xff]
        %v309 = vld [vmem:[%s2 + $0x8] sm:$0xff]
        %v310 = vld [vmem:[%s2 + $0x10] sm:$0xff]
        %v311 = vld [vmem:[%s2 + $0x18] sm:$0xff]
        %v312 = vld [vmem:[%s2 + $0x20] sm:$0xff]
        %v313 = vld [vmem:[%s2 + $0x28] sm:$0xff]
        %v314 = vld [vmem:[%s2 + $0x30] sm:$0xff]
        %v315 = vld [vmem:[%s2 + $0x38] sm:$0xff]
        %317 = vset.pattern.permute.xlu0 0
        %318 = vperm.xlu0 %317, %v308
        %v319 = vpop.permute.xlu0 %318
        %322 = vset.pattern.permute.xlu0 0
        %323 = vperm.xlu0 %322, %v309
        %v324 = vpop.permute.xlu0 %323
        %327 = vset.pattern.permute.xlu0 0
        %328 = vperm.xlu0 %327, %v310
        %v329 = vpop.permute.xlu0 %328
        %332 = vset.pattern.permute.xlu0 0
        %333 = vperm.xlu0 %332, %v311
        %v334 = vpop.permute.xlu0 %333
        %337 = vset.pattern.permute.xlu0 0
        %338 = vperm.xlu0 %337, %v312
        %v339 = vpop.permute.xlu0 %338
        %342 = vset.pattern.permute.xlu0 0
        %343 = vperm.xlu0 %342, %v313
        %v344 = vpop.permute.xlu0 %343
        %347 = vset.pattern.permute.xlu0 0
        %348 = vperm.xlu0 %347, %v314
        %v349 = vpop.permute.xlu0 %348
        %352 = vset.pattern.permute.xlu0 0
        %353 = vperm.xlu0 %352, %v315
        %v354 = vpop.permute.xlu0 %353
        %v364 = vunpack.c.l.b16 %v292
        %v365 = vunpack.c.l.b16 %v293
        %v366 = vunpack.c.l.b16 %v294
        %v367 = vunpack.c.l.b16 %v295
        %v368 = vunpack.c.l.b16 %v296
        %v369 = vunpack.c.l.b16 %v297
        %v370 = vunpack.c.l.b16 %v298
        %v371 = vunpack.c.l.b16 %v299
        %v372 = vpack.c.b16 %v365, %v364
        %v373 = vpack.c.b16 %v367, %v366
        %v374 = vpack.c.b16 %v369, %v368
        %v375 = vpack.c.b16 %v371, %v370
        %v384 = vunpack.c.l.b16 %v300
        %v385 = vunpack.c.h.b16 %v300
        %v386 = vunpack.c.l.b16 %v301
        %v387 = vunpack.c.h.b16 %v301
        %v388 = vunpack.c.l.b16 %v302
        %v389 = vunpack.c.h.b16 %v302
        %v390 = vunpack.c.l.b16 %v303
        %v391 = vunpack.c.h.b16 %v303
        %v392 = vunpack.c.l.b16 %v304
        %v393 = vunpack.c.h.b16 %v304
        %v394 = vunpack.c.l.b16 %v305
        %v395 = vunpack.c.h.b16 %v305
        %v396 = vunpack.c.l.b16 %v306
        %v397 = vunpack.c.h.b16 %v306
        %v398 = vunpack.c.l.b16 %v307
        %v399 = vunpack.c.h.b16 %v307
        %v400 = vpack.c.b16 %v386, %v384
        %v401 = vpack.c.b16 %v387, %v385
        %v402 = vpack.c.b16 %v390, %v388
        %v403 = vpack.c.b16 %v391, %v389
        %v404 = vpack.c.b16 %v394, %v392
        %v405 = vpack.c.b16 %v395, %v393
        %v406 = vpack.c.b16 %v398, %v396
        %v407 = vpack.c.b16 %v399, %v397
        %vm416 = vcmask 523264
        %v418 = vsel %vm416, %v372, 0
        %v421 = vsel %vm416, %v373, 0
        %v424 = vsel %vm416, %v374, 0
        %v427 = vsel %vm416, %v375, 0
        %429 = vmatpush.bf16.msra.mxu0 0
        %430 = vmatpush.bf16.msra.mxu0 0
        %431 = vmatpush.bf16.msra.mxu0 0
        %432 = vmatpush.bf16.msra.mxu0 0
        %433 = vmatpush.bf16.msra.mxu0 %v406
        %434 = vmatpush.bf16.msra.mxu0 %v404
        %435 = vmatpush.bf16.msra.mxu0 %v402
        %436 = vmatpush.bf16.msra.mxu0 %v400
        %437 = vmatmul.bf16.gmra.mxu0 %v418
        %v438 = vpop.f32.mrf.mxu0
        %v439 = vadd.f32 %v319, %v438
        %v440 = vpop.f32.mrf.mxu0
        %v441 = vadd.f32 %v324, %v440
        %442 = vmatmul.bf16.gmra.mxu0 %v421
        %v443 = vpop.f32.mrf.mxu0
        %v444 = vadd.f32 %v329, %v443
        %v445 = vpop.f32.mrf.mxu0
        %v446 = vadd.f32 %v334, %v445
        %447 = vmatmul.bf16.gmra.mxu0 %v424
        %v448 = vpop.f32.mrf.mxu0
        %v449 = vadd.f32 %v339, %v448
        %v450 = vpop.f32.mrf.mxu0
        %v451 = vadd.f32 %v344, %v450
        %452 = vmatmul.bf16.gmra.mxu0 %v427
        %v453 = vpop.f32.mrf.mxu0
        %v454 = vadd.f32 %v349, %v453
        %v455 = vpop.f32.mrf.mxu0
        %v456 = vadd.f32 %v354, %v455
        %457 = vdwg.mxu0
        %458 = vmatpush.bf16.msra.mxu0 0
        %459 = vmatpush.bf16.msra.mxu0 0
        %460 = vmatpush.bf16.msra.mxu0 0
        %461 = vmatpush.bf16.msra.mxu0 0
        %462 = vmatpush.bf16.msra.mxu0 %v407
        %463 = vmatpush.bf16.msra.mxu0 %v405
        %464 = vmatpush.bf16.msra.mxu0 %v403
        %465 = vmatpush.bf16.msra.mxu0 %v401
        %466 = vmatmul.bf16.gmra.mxu0 %v418
        %v467 = vpop.f32.mrf.mxu0
        %v468 = vadd.f32 %v319, %v467
        %v469 = vpop.f32.mrf.mxu0
        %v470 = vadd.f32 %v324, %v469
        %471 = vmatmul.bf16.gmra.mxu0 %v421
        %v472 = vpop.f32.mrf.mxu0
        %v473 = vadd.f32 %v329, %v472
        %v474 = vpop.f32.mrf.mxu0
        %v475 = vadd.f32 %v334, %v474
        %476 = vmatmul.bf16.gmra.mxu0 %v424
        %v477 = vpop.f32.mrf.mxu0
        %v478 = vadd.f32 %v339, %v477
        %v479 = vpop.f32.mrf.mxu0
        %v480 = vadd.f32 %v344, %v479
        %481 = vmatmul.bf16.gmra.mxu0 %v427
        %v482 = vpop.f32.mrf.mxu0
        %v483 = vadd.f32 %v349, %v482
        %v484 = vpop.f32.mrf.mxu0
        %v485 = vadd.f32 %v354, %v484
        %486 = vdwg.mxu0
        %v487 = vmax.f32 %v439, 0.0
        %v488 = vmax.f32 %v468, 0.0
        %v489 = vmax.f32 %v441, 0.0
        %v490 = vmax.f32 %v470, 0.0
        %v491 = vmax.f32 %v444, 0.0
        %v492 = vmax.f32 %v473, 0.0
        %v493 = vmax.f32 %v446, 0.0
        %v494 = vmax.f32 %v475, 0.0
        %v495 = vmax.f32 %v449, 0.0
        %v496 = vmax.f32 %v478, 0.0
        %v497 = vmax.f32 %v451, 0.0
        %v498 = vmax.f32 %v480, 0.0
        %v499 = vmax.f32 %v454, 0.0
        %v500 = vmax.f32 %v483, 0.0
        %v501 = vmax.f32 %v456, 0.0
        %v502 = vmax.f32 %v485, 0.0
        %v503 = vld [vmem:[%s3] sm:$0x3]
        %v504 = vpack.c.bf16 %v489, %v487
        %v505 = vpack.c.bf16 %v490, %v488
        %v506 = vpack.c.bf16 %v493, %v491
        %v507 = vpack.c.bf16 %v494, %v492
        %v508 = vpack.c.bf16 %v497, %v495
        %v509 = vpack.c.bf16 %v498, %v496
        %v510 = vpack.c.bf16 %v501, %v499
        %v511 = vpack.c.bf16 %v502, %v500
        %v512 = vld [vmem:[%s4] sm:$0x7]
        %514 = vset.pattern.permute.xlu0 0
        %515 = vperm.xlu0 %514, %v512
        %v516 = vpop.permute.xlu0 %515
        %v519 = vsel %vm416, %v503, 0
        %521 = vmatpush.bf16.msra.mxu0 0
        %522 = vmatpush.bf16.msra.mxu0 0
        %523 = vmatpush.bf16.msra.mxu0 0
        %524 = vmatpush.bf16.msra.mxu0 0
        %525 = vmatpush.bf16.msra.mxu0 %v510
        %526 = vmatpush.bf16.msra.mxu0 %v508
        %527 = vmatpush.bf16.msra.mxu0 %v506
        %528 = vmatpush.bf16.msra.mxu0 %v504
        %529 = vmatmul.bf16.gmra.mxu0 %v519
        %v530 = vpop.f32.mrf.mxu0
        %v531 = vadd.f32 %v516, %v530
        %v532 = vpop.f32.mrf.mxu0
        %533 = vdwg.mxu0
        %534 = vmatpush.bf16.msra.mxu0 0
        %535 = vmatpush.bf16.msra.mxu0 0
        %536 = vmatpush.bf16.msra.mxu0 0
        %537 = vmatpush.bf16.msra.mxu0 0
        %538 = vmatpush.bf16.msra.mxu0 %v511
        %539 = vmatpush.bf16.msra.mxu0 %v509
        %540 = vmatpush.bf16.msra.mxu0 %v507
        %541 = vmatpush.bf16.msra.mxu0 %v505
        %542 = vmatmul.bf16.gmra.mxu0 %v519
        %v543 = vpop.f32.mrf.mxu0
        %v544 = vadd.f32 %v516, %v543
        %v545 = vpop.f32.mrf.mxu0
        %546 = vdwg.mxu0
        %v547 = vsub.f32 0.0, %v531
        %v548 = vsub.f32 0.0, %v544
        %v549 = vmul.f32 %v547, 1.442695
        %v550 = vpow.pop %v549
        %v551 = vmul.f32 %v548, 1.442695
        %v552 = vpow.pop %v551
        %v553 = vadd.f32 %v550, 1.0
        %v554 = vadd.f32 %v552, 1.0
        %v555 = vrcp.pop %v553
        %v556 = vmul.f32 %v553, %v555
        %v557 = vsub.f32 1.0, %v556
        %v558 = vmul.f32 %v555, %v557
        %v559 = vadd.f32 %v555, %v558
        %vm560 = vweird.f32 %v553
        %vm561 = vweird.f32 %v555
        %vm562 = vmor %vm560, %vm561
        %v563 = vsel %vm562, %v555, %v559
        %v564 = vand.u32 2147483647, %v553
        %vm565 = vcmp.eq.f32.partialorder %v564, 8.507059e+37
        %v566 = vand.u32 %v553, 2147483648
        %v567 = vor.u32 1.1754944e-38, %v566
        %v568 = vsel %vm565, %v567, %v563
        %v569 = vmul.f32 1.0, %v568
        %v570 = vrcp.pop %v554
        %v571 = vmul.f32 %v554, %v570
        %v572 = vsub.f32 1.0, %v571
        %v573 = vmul.f32 %v570, %v572
        %v574 = vadd.f32 %v570, %v573
        %vm575 = vweird.f32 %v554
        %vm576 = vweird.f32 %v570
        %vm577 = vmor %vm575, %vm576
        %v578 = vsel %vm577, %v570, %v574
        %v579 = vand.u32 2147483647, %v554
        %vm580 = vcmp.eq.f32.partialorder %v579, 8.507059e+37
        %v581 = vand.u32 %v554, 2147483648
        %v582 = vor.u32 1.1754944e-38, %v581
        %v583 = vsel %vm580, %v582, %v578
        %v584 = vmul.f32 1.0, %v583
        %v587 = vrot.slane %v584, 4
        %vm588 = vcmask 1043456
        %v589 = vsel %vm588, %v569, %v587
        %591 = vst [vmem:[%s289] sm:$0x77] %v589
        %s592 = smul.u32 2, %s16
        %p593 = scmp.lt.s32.totalorder %s592, 3
        %s594 = scalar_select %p593, %s592, 3
        %s595 = smul.addr %s594, 4
        %s596 = scalar_lea.vmem %s5, %s595
        // Predicated region
        $region79: #{nvr_renderer_forward.1} parent=73 // pred_check
          %p597 = pneg %p144
        $region80: #{nvr_renderer_forward.1} parent=73 // pred_check_branch
          %599 = sbr.rel (%p597) target = $region82
        $region81: #{nvr_renderer_forward.1} parent=73 // pred_region
          %s600 = smul.u32 2, %s16
        $region82: #{nvr_renderer_forward.1} parent=73 // pred_fallthru
          _
      $region74: #{nvr_renderer_forward.1} parent=5 // pred_fallthru
        _
      %p601 = scmp.le.s32.totalorder 2, %s11
      // Predicated region
      $region83: #{nvr_renderer_forward.1} parent=5 // pred_check
        %p602 = pneg %p601
      $region84: #{nvr_renderer_forward.1} parent=5 // pred_check_branch
        %604 = sbr.rel (%p602) target = $region86
      $region85: #{nvr_renderer_forward.1} parent=5 // pred_region
        %s605 = ssub.s32 %s11, 2
        // Predicated region
        $region87: #{nvr_renderer_forward.1} parent=85 // pred_check
          %p606 = pneg %p150
        $region88: #{nvr_renderer_forward.1} parent=85 // pred_check_branch
          %608 = sbr.rel (%p606) target = $region90
        $region89: #{nvr_renderer_forward.1} parent=85 // pred_region
          %s609 = smul.u32 2, %s17
          %p610 = scmp.lt.s32.totalorder %s609, 3
          %s611 = scalar_select %p610, %s609, 3
          %s612 = smul.addr %s611, 4
          %s613 = scalar_lea.vmem %s5, %s612
        $region90: #{nvr_renderer_forward.1} parent=85 // pred_fallthru
          _
      $region86: #{nvr_renderer_forward.1} parent=5 // pred_fallthru
        _
    $region6: #{nvr_renderer_forward.1} parent=1 // loop_footer
      %s15 = sadd.s32 1, %s11
    $region7: #{nvr_renderer_forward.1} parent=1 // loop_footer_branch
      %10 = sbr.rel target = $region3
    $region8: #{nvr_renderer_forward.1} parent=1 // loop_exit
      _

</llo_original>
